<compile_context>
chip_gen: v5e
topology: v5e:2x2
jax: 0.10.0
libtpu: 0.0.40
codegen_flags: <defaults>
</compile_context>

<pallas_src>
from typing import Dict, NamedTuple

import numpy as np
import jax
import jax.numpy as jnp
from jax.experimental import pallas as pl
from jax.experimental.pallas import tpu as pltpu


class RolloutBuffer(NamedTuple):
    preds: jax.Array           # [n_sc, n_ag, n_K, n_step_total, 3] (x, y, yaw)
    step_future_start: int


_LANE = 128
_SUB = 8
_PI = float(np.pi)
_TWO_PI = float(2.0 * np.pi)
_INV_TWO_PI = float(1.0 / (2.0 * np.pi))


def _round_up(x: int, m: int) -> int:
    return (x + m - 1) // m * m


# ----------------------------------------------------------------------------
# Pallas kernel: local -> global SE(2) transform on stacked channel planes.
#   xyw_ref / out_ref: VMEM (3, TILE_R, 128) f32  (channels: x, y, yaw)
#   cos/sin/cx/cy/yaw0: SMEM [n_sc] f32, indexed with the scenario grid axis.
# ----------------------------------------------------------------------------
def _se2_to_global_kernel(cos_ref, sin_ref, cx_ref, cy_ref, yaw0_ref,
                          xyw_ref, out_ref):
    i = pl.program_id(0)
    c = cos_ref[i]
    s = sin_ref[i]
    cx = cx_ref[i]
    cy = cy_ref[i]
    y0 = yaw0_ref[i]

    x = xyw_ref[0]
    y = xyw_ref[1]
    # torch_pos2global: rotate row-vector by +yaw, then translate by center.
    out_ref[0] = x * c - y * s + cx
    out_ref[1] = x * s + y * c + cy
    # torch_rad2global: add scenario yaw, wrap to [-pi, pi).
    # mod(w+pi, 2pi) - pi  ==  w - 2pi * floor((w+pi) / (2pi)), with a constant
    # reciprocal instead of a divide.
    w = xyw_ref[2] + y0
    out_ref[2] = w - _TWO_PI * jnp.floor((w + _PI) * _INV_TWO_PI)


def se2_to_global(planes, scenario_center, scenario_yaw, *, max_tile_rows=512):
    """planes: [n_sc, 3, M] f32 channel planes (x, y, yaw). Returns [n_sc, 3, M]."""
    n_sc, n_ch, m = planes.shape
    assert n_ch == 3

    # Pad the point axis so rows of 128 lanes tile cleanly into (8,128) vregs.
    m_pad0 = _round_up(max(m, _LANE), _LANE * _SUB)
    r0 = m_pad0 // _LANE
    tile_r = min(r0, max_tile_rows)          # multiple of 8 (r0 is)
    r = _round_up(r0, tile_r)
    m_pad = r * _LANE

    planes_p = jnp.pad(planes.astype(jnp.float32), ((0, 0), (0, 0), (0, m_pad - m)))
    planes_p = planes_p.reshape(n_sc, 3, r, _LANE)

    yaw0 = scenario_yaw.astype(jnp.float32)
    cos = jnp.cos(yaw0)
    sin = jnp.sin(yaw0)
    cx = scenario_center[:, 0].astype(jnp.float32)
    cy = scenario_center[:, 1].astype(jnp.float32)

    smem_spec = pl.BlockSpec(memory_space=pltpu.MemorySpace.SMEM)
    plane_spec = pl.BlockSpec((None, 3, tile_r, _LANE), lambda i, j: (i, 0, j, 0))

    out = pl.pallas_call(
        _se2_to_global_kernel,
        out_shape=jax.ShapeDtypeStruct((n_sc, 3, r, _LANE), jnp.float32),
        grid=(n_sc, r // tile_r),
        in_specs=[smem_spec] * 5 + [plane_spec],
        out_specs=plane_spec,
        compiler_params=pltpu.CompilerParams(
            dimension_semantics=("parallel", "parallel"),
            vmem_limit_bytes=32 * 1024 * 1024,
        ),
    )(cos, sin, cx, cy, yaw0, planes_p)

    return out.reshape(n_sc, 3, m_pad)[:, :, :m]


# ----------------------------------------------------------------------------
# Module
# ----------------------------------------------------------------------------
class WOSACPostProcessing:
    def __init__(self, step_gt, step_current, const_vel_z_sim, const_vel_no_sim,
                 w_road_edge, use_wosac_col):
        # No trainable parameters in this module.
        self.step_gt = step_gt
        self.step_current = step_current
        self.const_vel_z_sim = const_vel_z_sim
        self.const_vel_no_sim = const_vel_no_sim
        self.n_joint_future = 32
        self.w_road_edge = w_road_edge
        self.use_wosac_col = use_wosac_col

    def forward(self, batch: Dict, buffer: RolloutBuffer) -> Dict:
        preds = buffer.preds                                   # [n_sc, n_ag, n_K, n_step_tot, 3]
        n_sc, n_ag, n_K = preds.shape[0], preds.shape[1], preds.shape[2]
        trajs = preds[:, :, :, buffer.step_future_start:]      # native layout, no early permute
        n_step_f = trajs.shape[3]
        m_sim = n_ag * n_K * n_step_f

        # ---- sim agents: native-order channel planes [n_sc, 3, m_sim] ----
        xyw_sim = jnp.transpose(trajs.reshape(n_sc, m_sim, 3), (0, 2, 1)).astype(jnp.float32)

        # ---- no-sim agents: native-order channel planes [n_sc, 3, m_ns] ----
        pos_ns = batch["history/agent_no_sim/pos"][..., :2]    # [n_sc, S, A_ns, 2]
        yaw_ns = batch["history/agent_no_sim/yaw_bbox"]        # [n_sc, S, A_ns, 1]
        n_step_h, n_ag_ns = pos_ns.shape[1], pos_ns.shape[2]
        m_ns = n_step_h * n_ag_ns
        xyw_ns = jnp.concatenate([pos_ns, yaw_ns], axis=-1)    # [n_sc, S, A_ns, 3]
        xyw_ns = jnp.transpose(xyw_ns.reshape(n_sc, m_ns, 3), (0, 2, 1)).astype(jnp.float32)

        # ---- one fused kernel launch over all (sim + no-sim) points ----
        planes = jnp.concatenate([xyw_sim, xyw_ns], axis=-1)   # [n_sc, 3, m_sim + m_ns]
        out = se2_to_global(planes, batch["scenario_center"], batch["scenario_yaw"])

        # ---- un-plane + single final permute into the module's output layout ----
        sim_g = out[:, :, :m_sim].reshape(n_sc, 3, n_ag, n_K, n_step_f)
        sim_g = jnp.transpose(sim_g, (0, 3, 2, 4, 1))          # [n_sc, n_K, n_ag, n_step_f, 3]
        pos_sim_g = sim_g[..., :2]
        yaw_sim_g = sim_g[..., 2:3]

        ns_g = out[:, :, m_sim:m_sim + m_ns].reshape(n_sc, 3, n_step_h, n_ag_ns)
        ns_g = jnp.transpose(ns_g, (0, 3, 2, 1))               # [n_sc, A_ns, S, 3]
        pos_no_sim_g = ns_g[..., :2]
        yaw_no_sim_g = ns_g[..., 2:3]

        # ---- scenario_id string -> int32[16] ----
        # TODO(synk): string encoding is an inherently host-side Python loop.
        scenario_id = []
        for str_id in batch["scenario_id"]:
            int_id = [-1] * 16
            for i, c in enumerate(str_id):
                int_id[i] = ord(c)
            scenario_id.append(np.asarray(int_id, dtype=np.int32)[None])
        scenario_id = jnp.asarray(np.concatenate(scenario_id, axis=0))

        pos_hist = batch["history/agent/pos"]                  # [n_sc, S, n_ag, 3]
        n_ag_hist = pos_hist.shape[2]

        wosac_data = {
            "scenario_id": scenario_id,
            "valid_sim": jnp.transpose(batch["history/agent/valid"], (0, 2, 1)),
            "pos_sim": pos_sim_g,
            "z_sim": jnp.zeros((n_sc, n_ag_hist, pos_hist.shape[1], 1), pos_hist.dtype),
            "yaw_sim": yaw_sim_g,
            "valid_no_sim": jnp.transpose(batch["history/agent_no_sim/valid"], (0, 2, 1)),
            "object_id_sim": batch["history/agent/object_id"],
            "pos_no_sim": pos_no_sim_g,
            "z_no_sim": jnp.zeros((n_sc, n_ag_ns, n_step_h, 1),
                                  batch["history/agent_no_sim/pos"].dtype),
            "yaw_no_sim": yaw_no_sim_g,
            "object_id_no_sim": batch["history/agent_no_sim/object_id"],
        }
        return wosac_data


# ----------------------------------------------------------------------------
# Demo / correctness check
# ----------------------------------------------------------------------------
if __name__ == "__main__":
    key = jax.random.PRNGKey(0)
    ks = jax.random.split(key, 10)

    n_sc, n_ag, n_K = 2, 8, 4
    n_step_total, step_future_start = 16, 8
    n_step_hist, n_ag_ns = 8, 4

    preds = jax.random.normal(ks[0], (n_sc, n_ag, n_K, n_step_total, 3), jnp.float32) * 10.0
    buffer = RolloutBuffer(preds=preds, step_future_start=step_future_start)

    batch = {
        "scenario_center": jax.random.normal(ks[1], (n_sc, 2), jnp.float32) * 100.0,
        "scenario_yaw": jax.random.uniform(ks[2], (n_sc,), jnp.float32,
                                           minval=-np.pi, maxval=np.pi),
        "history/agent_no_sim/pos": jax.random.normal(ks[3], (n_sc, n_step_hist, n_ag_ns, 3),
                                                      jnp.float32) * 10.0,
        "history/agent_no_sim/yaw_bbox": jax.random.uniform(
            ks[4], (n_sc, n_step_hist, n_ag_ns, 1), jnp.float32, minval=-np.pi, maxval=np.pi),
        "history/agent/valid": jax.random.bernoulli(ks[5], 0.9, (n_sc, n_step_hist, n_ag)),
        "history/agent/pos": jax.random.normal(ks[6], (n_sc, n_step_hist, n_ag, 3), jnp.float32),
        "history/agent_no_sim/valid": jax.random.bernoulli(ks[7], 0.9, (n_sc, n_step_hist, n_ag_ns)),
        "history/agent/object_id": jnp.arange(n_sc * n_ag, dtype=jnp.int32).reshape(n_sc, n_ag),
        "history/agent_no_sim/object_id": jnp.arange(n_sc * n_ag_ns, dtype=jnp.int32).reshape(
            n_sc, n_ag_ns),
        "scenario_id": ["scenario_0000", "scenario_0001"],
    }

    post = WOSACPostProcessing(step_gt=15, step_current=7, const_vel_z_sim=True,
                               const_vel_no_sim=True, w_road_edge=2.0, use_wosac_col=True)
    wosac_data = post.forward(batch, buffer)
    jax.block_until_ready(wosac_data["pos_sim"])
    jax.block_until_ready(wosac_data["yaw_no_sim"])

    # ---- pure numpy reference check for the kernel-computed tensors ----
    def _wrap(a):
        return np.mod(a + np.pi, 2.0 * np.pi) - np.pi

    yaw_sc = np.asarray(batch["scenario_yaw"])
    cos = np.cos(yaw_sc)[:, None, None, None]
    sin = np.sin(yaw_sc)[:, None, None, None]
    cx = np.asarray(batch["scenario_center"])[:, 0][:, None, None, None]
    cy = np.asarray(batch["scenario_center"])[:, 1][:, None, None, None]

    trajs_np = np.transpose(np.asarray(preds)[:, :, :, step_future_start:], (0, 2, 1, 3, 4))
    x, y, w = trajs_np[..., 0], trajs_np[..., 1], trajs_np[..., 2]
    ref_pos_sim = np.stack([x * cos - y * sin + cx, x * sin + y * cos + cy], axis=-1)
    ref_yaw_sim = _wrap(w + yaw_sc[:, None, None, None])[..., None]

    pns = np.transpose(np.asarray(batch["history/agent_no_sim/pos"])[..., :2], (0, 2, 1, 3))
    yns = np.transpose(np.asarray(batch["history/agent_no_sim/yaw_bbox"]), (0, 2, 1, 3))
    xn, ynn, wn = pns[..., 0], pns[..., 1], yns[..., 0]
    cos3, sin3 = cos[..., 0], sin[..., 0]
    cx3, cy3 = cx[..., 0], cy[..., 0]
    ref_pos_ns = np.stack([xn * cos3 - ynn * sin3 + cx3, xn * sin3 + ynn * cos3 + cy3], axis=-1)
    ref_yaw_ns = _wrap(wn + yaw_sc[:, None, None])[..., None]

    np.testing.assert_allclose(np.asarray(wosac_data["pos_sim"]), ref_pos_sim,
                               rtol=1e-5, atol=1e-3)
    np.testing.assert_allclose(np.asarray(wosac_data["yaw_sim"]), ref_yaw_sim,
                               rtol=1e-5, atol=1e-3)
    np.testing.assert_allclose(np.asarray(wosac_data["pos_no_sim"]), ref_pos_ns,
                               rtol=1e-5, atol=1e-3)
    np.testing.assert_allclose(np.asarray(wosac_data["yaw_no_sim"]), ref_yaw_ns,
                               rtol=1e-5, atol=1e-3)

    print("KERNEL_OK")
</pallas_src>

<mosaic_0001>
module attributes {stable_mosaic.version = 11 : i64} {
  func.func @_se2_to_global_kernel(%arg0: i32, %arg1: i32, %arg2: memref<2xf32, #tpu.memory_space<smem>>, %arg3: memref<2xf32, #tpu.memory_space<smem>>, %arg4: memref<2xf32, #tpu.memory_space<smem>>, %arg5: memref<2xf32, #tpu.memory_space<smem>>, %arg6: memref<2xf32, #tpu.memory_space<smem>>, %arg7: memref<1x3x8x128xf32, #tpu.memory_space<vmem>>, %arg8: memref<1x3x8x128xf32, #tpu.memory_space<vmem>>) attributes {dimension_semantics = [#tpu.dimension_semantics<parallel>, #tpu.dimension_semantics<parallel>], iteration_bounds = array<i64: 2, 1>, scalar_prefetch = 0 : i64, scratch_operands = 0 : i64, tpu.core_type = #tpu.core_type<tc>, window_params = [{transform_indices = @transform_0, window_bounds = array<i64: 2>}, {transform_indices = @transform_1, window_bounds = array<i64: 2>}, {transform_indices = @transform_2, window_bounds = array<i64: 2>}, {transform_indices = @transform_3, window_bounds = array<i64: 2>}, {transform_indices = @transform_4, window_bounds = array<i64: 2>}, {transform_indices = @transform_5, window_bounds = array<i64: 1, 3, 8, 128>}, {transform_indices = @transform_6, window_bounds = array<i64: 1, 3, 8, 128>}]} {
    %0 = arith.index_cast %arg0 : i32 to index
    %1 = memref.load %arg2[%0] : memref<2xf32, #tpu.memory_space<smem>>
    %2 = arith.index_cast %arg0 : i32 to index
    %3 = memref.load %arg3[%2] : memref<2xf32, #tpu.memory_space<smem>>
    %4 = arith.index_cast %arg0 : i32 to index
    %5 = memref.load %arg4[%4] : memref<2xf32, #tpu.memory_space<smem>>
    %6 = arith.index_cast %arg0 : i32 to index
    %7 = memref.load %arg5[%6] : memref<2xf32, #tpu.memory_space<smem>>
    %8 = arith.index_cast %arg0 : i32 to index
    %9 = memref.load %arg6[%8] : memref<2xf32, #tpu.memory_space<smem>>
    %c0 = arith.constant 0 : index
    %c0_0 = arith.constant 0 : index
    %c0_1 = arith.constant 0 : index
    %c0_2 = arith.constant 0 : index
    %10 = vector.load %arg7[%c0, %c0_0, %c0_1, %c0_2] : memref<1x3x8x128xf32, #tpu.memory_space<vmem>>, vector<1x1x8x128xf32>
    %11 = vector.shape_cast %10 : vector<1x1x8x128xf32> to vector<8x128xf32>
    %c0_3 = arith.constant 0 : index
    %c1 = arith.constant 1 : index
    %c0_4 = arith.constant 0 : index
    %c0_5 = arith.constant 0 : index
    %12 = vector.load %arg7[%c0_3, %c1, %c0_4, %c0_5] : memref<1x3x8x128xf32, #tpu.memory_space<vmem>>, vector<1x1x8x128xf32>
    %13 = vector.shape_cast %12 : vector<1x1x8x128xf32> to vector<8x128xf32>
    %14 = vector.broadcast %1 : f32 to vector<8x128xf32>
    %15 = arith.mulf %11, %14 : vector<8x128xf32>
    %16 = vector.broadcast %3 : f32 to vector<8x128xf32>
    %17 = arith.mulf %13, %16 : vector<8x128xf32>
    %18 = arith.subf %15, %17 : vector<8x128xf32>
    %19 = vector.broadcast %5 : f32 to vector<8x128xf32>
    %20 = arith.addf %18, %19 : vector<8x128xf32>
    %c0_6 = arith.constant 0 : index
    %c0_7 = arith.constant 0 : index
    %c0_8 = arith.constant 0 : index
    %c0_9 = arith.constant 0 : index
    %21 = vector.load %arg8[%c0_6, %c0_7, %c0_8, %c0_9] : memref<1x3x8x128xf32, #tpu.memory_space<vmem>>, vector<1x1x8x128xf32>
    %22 = vector.shape_cast %21 : vector<1x1x8x128xf32> to vector<8x128xf32>
    %23 = vector.shape_cast %20 : vector<8x128xf32> to vector<1x1x8x128xf32>
    tpu.vector_store %arg8[%c0_6, %c0_7, %c0_8, %c0_9], %23 {strides = array<i32>} : memref<1x3x8x128xf32, #tpu.memory_space<vmem>>, vector<1x1x8x128xf32>,
    %24 = vector.broadcast %3 : f32 to vector<8x128xf32>
    %25 = arith.mulf %11, %24 : vector<8x128xf32>
    %26 = vector.broadcast %1 : f32 to vector<8x128xf32>
    %27 = arith.mulf %13, %26 : vector<8x128xf32>
    %28 = arith.addf %25, %27 : vector<8x128xf32>
    %29 = vector.broadcast %7 : f32 to vector<8x128xf32>
    %30 = arith.addf %28, %29 : vector<8x128xf32>
    %c0_10 = arith.constant 0 : index
    %c1_11 = arith.constant 1 : index
    %c0_12 = arith.constant 0 : index
    %c0_13 = arith.constant 0 : index
    %31 = vector.load %arg8[%c0_10, %c1_11, %c0_12, %c0_13] : memref<1x3x8x128xf32, #tpu.memory_space<vmem>>, vector<1x1x8x128xf32>
    %32 = vector.shape_cast %31 : vector<1x1x8x128xf32> to vector<8x128xf32>
    %33 = vector.shape_cast %30 : vector<8x128xf32> to vector<1x1x8x128xf32>
    tpu.vector_store %arg8[%c0_10, %c1_11, %c0_12, %c0_13], %33 {strides = array<i32>} : memref<1x3x8x128xf32, #tpu.memory_space<vmem>>, vector<1x1x8x128xf32>,
    %c0_14 = arith.constant 0 : index
    %c2 = arith.constant 2 : index
    %c0_15 = arith.constant 0 : index
    %c0_16 = arith.constant 0 : index
    %34 = vector.load %arg7[%c0_14, %c2, %c0_15, %c0_16] : memref<1x3x8x128xf32, #tpu.memory_space<vmem>>, vector<1x1x8x128xf32>
    %35 = vector.shape_cast %34 : vector<1x1x8x128xf32> to vector<8x128xf32>
    %36 = vector.broadcast %9 : f32 to vector<8x128xf32>
    %37 = arith.addf %35, %36 : vector<8x128xf32>
    %cst = arith.constant 3.14159274 : f32
    %38 = vector.broadcast %cst : f32 to vector<8x128xf32>
    %39 = arith.addf %37, %38 : vector<8x128xf32>
    %cst_17 = arith.constant 0.159154937 : f32
    %40 = vector.broadcast %cst_17 : f32 to vector<8x128xf32>
    %41 = arith.mulf %39, %40 : vector<8x128xf32>
    %42 = math.floor %41 : vector<8x128xf32>
    %cst_18 = arith.constant 6.28318548 : f32
    %43 = vector.broadcast %cst_18 : f32 to vector<8x128xf32>
    %44 = arith.mulf %43, %42 : vector<8x128xf32>
    %45 = arith.subf %37, %44 : vector<8x128xf32>
    %c0_19 = arith.constant 0 : index
    %c2_20 = arith.constant 2 : index
    %c0_21 = arith.constant 0 : index
    %c0_22 = arith.constant 0 : index
    %46 = vector.load %arg8[%c0_19, %c2_20, %c0_21, %c0_22] : memref<1x3x8x128xf32, #tpu.memory_space<vmem>>, vector<1x1x8x128xf32>
    %47 = vector.shape_cast %46 : vector<1x1x8x128xf32> to vector<8x128xf32>
    %48 = vector.shape_cast %45 : vector<8x128xf32> to vector<1x1x8x128xf32>
    tpu.vector_store %arg8[%c0_19, %c2_20, %c0_21, %c0_22], %48 {strides = array<i32>} : memref<1x3x8x128xf32, #tpu.memory_space<vmem>>, vector<1x1x8x128xf32>,
    return
  }
  func.func @transform_0(%arg0: i32, %arg1: i32) -> i32 {
    %c0_i32 = arith.constant 0 : i32
    %c0_i32_0 = arith.constant 0 : i32
    return %c0_i32 : i32
  }
  func.func @transform_1(%arg0: i32, %arg1: i32) -> i32 {
    %c0_i32 = arith.constant 0 : i32
    %c0_i32_0 = arith.constant 0 : i32
    return %c0_i32 : i32
  }
  func.func @transform_2(%arg0: i32, %arg1: i32) -> i32 {
    %c0_i32 = arith.constant 0 : i32
    %c0_i32_0 = arith.constant 0 : i32
    return %c0_i32 : i32
  }
  func.func @transform_3(%arg0: i32, %arg1: i32) -> i32 {
    %c0_i32 = arith.constant 0 : i32
    %c0_i32_0 = arith.constant 0 : i32
    return %c0_i32 : i32
  }
  func.func @transform_4(%arg0: i32, %arg1: i32) -> i32 {
    %c0_i32 = arith.constant 0 : i32
    %c0_i32_0 = arith.constant 0 : i32
    return %c0_i32 : i32
  }
  func.func @transform_5(%arg0: i32, %arg1: i32) -> (i32, i32, i32, i32) {
    %c0_i32 = arith.constant 0 : i32
    %c0_i32_0 = arith.constant 0 : i32
    %c0_i32_1 = arith.constant 0 : i32
    return %arg0, %c0_i32, %arg1, %c0_i32_0 : i32, i32, i32, i32
  }
  func.func @transform_6(%arg0: i32, %arg1: i32) -> (i32, i32, i32, i32) {
    %c0_i32 = arith.constant 0 : i32
    %c0_i32_0 = arith.constant 0 : i32
    %c0_i32_1 = arith.constant 0 : i32
    return %arg0, %c0_i32, %arg1, %c0_i32_0 : i32, i32, i32, i32
  }
}

</mosaic_0001>

<llo_original>
// kernel: tpu_custom_call.1
$region0: #{tpu_custom_call.1}
  #allocation0 [shape = 'u32[]', space=smem, size = 0x4, offset = 0x4, fixed_abs, tag = 'smem constant byte address 0x4 - core index']
  #allocation1 [shape = 'u32[72,128]{1,0:T(1,128)}', space=vmem, size = 0x9000, scoped, tag = 'internal scratch']
  %s0 = inlined_call_operand.hbm [shape: f32[2], index: 0, kind: input, shape index: {}]
  %s1 = inlined_call_operand.hbm [shape: f32[2], index: 1, kind: input, shape index: {}]
  %s2 = inlined_call_operand.vmem [shape: f32[2], index: 2, kind: input, shape index: {}]
  %s3 = inlined_call_operand.vmem [shape: f32[2], index: 3, kind: input, shape index: {}]
  %s4 = inlined_call_operand.vmem [shape: f32[2], index: 4, kind: input, shape index: {}]
  %s5 = inlined_call_operand.hbm [shape: f32[2,3,8,128], index: 5, kind: input, shape index: {}]
  %s6 = inlined_call_operand.hbm [shape: f32[2,3,8,128], index: 6, kind: output, shape index: {}]
  %s7 = sld [smem:[#allocation0]]
  $region81: #{tpu_custom_call.1} parent=0
    _
  %s9 = ssub.s32 1, %s7
  %s10 = scalar_select 0, %s9, %s7
  $region1: #{tpu_custom_call.1} parent=0
    #allocation2 [shape = 'u8[512]{0}', space=smem, size = 0x200, scoped, tag = 'input window, operand 0, single buffered']
    #allocation3 [shape = 's32[2]{0}', space=sflag, size = 0x8, scoped, tag = 'scoped memory for tpu_custom_call.1']
    #allocation4 [shape = 's32[2]{0}', space=sflag, size = 0x8, scoped, tag = 'scoped memory for tpu_custom_call.1']
    #allocation5 [shape = 's32[2]{0}', space=sflag, size = 0x8, scoped, tag = 'scoped memory for tpu_custom_call.1']
    #allocation6 [shape = 's32[2]{0}', space=sflag, size = 0x8, scoped, tag = 'scoped memory for tpu_custom_call.1']
    #allocation7 [shape = 'u8[512]{0}', space=smem, size = 0x200, scoped, tag = 'input window, operand 1, single buffered']
    #allocation8 [shape = 's32[1]{0}', space=sflag, size = 0x4, scoped, tag = 'scoped memory for tpu_custom_call.1']
    #allocation9 [shape = 'u8[512]{0}', space=smem, size = 0x200, scoped, tag = 'input window, operand 2, single buffered']
    #allocation10 [shape = 'u8[512]{0}', space=smem, size = 0x200, scoped, tag = 'input window, operand 3, single buffered']
    #allocation11 [shape = 's32[1]{0}', space=sflag, size = 0x4, scoped, tag = 'scoped memory for tpu_custom_call.1']
    #allocation12 [shape = 'u8[512]{0}', space=smem, size = 0x200, scoped, tag = 'input window, operand 4, single buffered']
    #allocation13 [shape = 'u8[24576]{0}', space=vmem, size = 0x6000, scoped, tag = 'input window, operand 5']
    #allocation14 [shape = 'u8[24576]{0}', space=vmem, size = 0x6000, scoped, tag = 'output window, operand 0']
    %11 = vsyncpa [#allocation5], 0
    %12 = vsyncpa [#allocation8], 0
    %13 = vsyncpa [#allocation6], 0
    %14 = vsyncpa [#allocation11], 0
    %15 = vsyncpa [#allocation3], 0
    %s16 = scalar_lea.sflag [#allocation3], 1
    %17 = vsyncpa %s16, 0
    %18 = vsyncpa [#allocation4], 0
    %s19 = scalar_lea.sflag [#allocation4], 1
    %20 = vsyncpa %s19, 0
    loop: start=0, step=1, limit=4
    $region2: #{tpu_custom_call.1} parent=1 // loop_pre_header
      _
    $region3: #{tpu_custom_call.1} parent=1 // loop_header
      %s22 = sphi 0, %s26
      %p23 = scmp.ge.s32.totalorder %s22, 4
      %s29 = sphi 0, %s41
      %s30 = sphi 0, %s37
      %s31 = sphi 0, %s29
      %s32 = sphi 0, %s30
      %s33 = sphi 0, %s31
      %s34 = sphi 0, %s32
      %s42 = sphi 0, %s42
      %s44 = sphi 0, %s42
      %s45 = sphi 0, %s44
      %s59 = sphi 0, %s45
      %s63 = sphi 0, %s63
      %s65 = sphi 0, %s63
      %s66 = sphi 0, %s65
      %s80 = sphi 0, %s66
      %s84 = sphi 0, %s84
      %s86 = sphi 0, %s84
      %s87 = sphi 0, %s86
      %s101 = sphi 0, %s87
      %s105 = sphi 0, %s105
      %s107 = sphi 0, %s105
      %s108 = sphi 0, %s107
      %s122 = sphi 0, %s108
      %s126 = sphi 0, %s126
      %s128 = sphi 0, %s126
      %s129 = sphi 0, %s128
      %s143 = sphi 0, %s129
      %s151 = sphi 0, %s153
      %s154 = sphi 0, %s151
      %s155 = sphi 0, %s154
      %s171 = sphi 0, %s155
      %s179 = sphi 0, %s181
      %s182 = sphi 0, %s179
      %s183 = sphi 0, %s182
      %s199 = sphi 0, %s183
    $region4: #{tpu_custom_call.1} parent=1 // loop_header_branch
      %25 = sbr.rel (%p23) target = $region8
    $region5: #{tpu_custom_call.1} parent=1 // loop_body
      %s27 = ssub.s32 %s22, 1
      %s28 = ssub.s32 %s22, 2
      %s35 = sadd.s32 1, %s30
      %p36 = scmp.ge.s32.totalorder %s35, 1
      %s37 = scalar_select %p36, 0, %s35
      %s38 = sadd.s32 1, %s29
      %s39 = scalar_select %p36, %s38, %s29
      %p40 = scmp.ge.s32.totalorder %s39, 2
      %s41 = scalar_select %p40, 0, %s39
      %s43 = sadd.s32 %s42, 1
      %p46 = scmp.eq.s32.totalorder %s22, 1
      %p47 = scmp.ne.s32.totalorder %s42, %s44
      %p48 = scmp.eq.s32.totalorder %s22, 0
      %p49 = por %p47, %p48
      %p50 = scmp.ne.s32.totalorder %s42, %s44
      %p51 = scmp.eq.s32.totalorder %s27, 1
      %p52 = por %p50, %p51
      %p53 = scmp.ne.s32.totalorder %s44, %s45
      %p54 = scmp.eq.s32.totalorder %s27, 0
      %p55 = por %p53, %p54
      %p56 = scmp.ne.s32.totalorder %s44, %s45
      %p57 = scmp.eq.s32.totalorder %s28, 1
      %p58 = por %p56, %p57
      %p60 = scmp.ne.s32.totalorder %s45, %s59
      %p61 = scmp.eq.s32.totalorder %s28, 0
      %p62 = por %p60, %p61
      %s64 = sadd.s32 %s63, 1
      %p67 = scmp.eq.s32.totalorder %s22, 1
      %p68 = scmp.ne.s32.totalorder %s63, %s65
      %p69 = scmp.eq.s32.totalorder %s22, 0
      %p70 = por %p68, %p69
      %p71 = scmp.ne.s32.totalorder %s63, %s65
      %p72 = scmp.eq.s32.totalorder %s27, 1
      %p73 = por %p71, %p72
      %p74 = scmp.ne.s32.totalorder %s65, %s66
      %p75 = scmp.eq.s32.totalorder %s27, 0
      %p76 = por %p74, %p75
      %p77 = scmp.ne.s32.totalorder %s65, %s66
      %p78 = scmp.eq.s32.totalorder %s28, 1
      %p79 = por %p77, %p78
      %p81 = scmp.ne.s32.totalorder %s66, %s80
      %p82 = scmp.eq.s32.totalorder %s28, 0
      %p83 = por %p81, %p82
      %s85 = sadd.s32 %s84, 1
      %p88 = scmp.eq.s32.totalorder %s22, 1
      %p89 = scmp.ne.s32.totalorder %s84, %s86
      %p90 = scmp.eq.s32.totalorder %s22, 0
      %p91 = por %p89, %p90
      %p92 = scmp.ne.s32.totalorder %s84, %s86
      %p93 = scmp.eq.s32.totalorder %s27, 1
      %p94 = por %p92, %p93
      %p95 = scmp.ne.s32.totalorder %s86, %s87
      %p96 = scmp.eq.s32.totalorder %s27, 0
      %p97 = por %p95, %p96
      %p98 = scmp.ne.s32.totalorder %s86, %s87
      %p99 = scmp.eq.s32.totalorder %s28, 1
      %p100 = por %p98, %p99
      %p102 = scmp.ne.s32.totalorder %s87, %s101
      %p103 = scmp.eq.s32.totalorder %s28, 0
      %p104 = por %p102, %p103
      %s106 = sadd.s32 %s105, 1
      %p109 = scmp.eq.s32.totalorder %s22, 1
      %p110 = scmp.ne.s32.totalorder %s105, %s107
      %p111 = scmp.eq.s32.totalorder %s22, 0
      %p112 = por %p110, %p111
      %p113 = scmp.ne.s32.totalorder %s105, %s107
      %p114 = scmp.eq.s32.totalorder %s27, 1
      %p115 = por %p113, %p114
      %p116 = scmp.ne.s32.totalorder %s107, %s108
      %p117 = scmp.eq.s32.totalorder %s27, 0
      %p118 = por %p116, %p117
      %p119 = scmp.ne.s32.totalorder %s107, %s108
      %p120 = scmp.eq.s32.totalorder %s28, 1
      %p121 = por %p119, %p120
      %p123 = scmp.ne.s32.totalorder %s108, %s122
      %p124 = scmp.eq.s32.totalorder %s28, 0
      %p125 = por %p123, %p124
      %s127 = sadd.s32 %s126, 1
      %p130 = scmp.eq.s32.totalorder %s22, 1
      %p131 = scmp.ne.s32.totalorder %s126, %s128
      %p132 = scmp.eq.s32.totalorder %s22, 0
      %p133 = por %p131, %p132
      %p134 = scmp.ne.s32.totalorder %s126, %s128
      %p135 = scmp.eq.s32.totalorder %s27, 1
      %p136 = por %p134, %p135
      %p137 = scmp.ne.s32.totalorder %s128, %s129
      %p138 = scmp.eq.s32.totalorder %s27, 0
      %p139 = por %p137, %p138
      %p140 = scmp.ne.s32.totalorder %s128, %s129
      %p141 = scmp.eq.s32.totalorder %s28, 1
      %p142 = por %p140, %p141
      %p144 = scmp.ne.s32.totalorder %s129, %s143
      %p145 = scmp.eq.s32.totalorder %s28, 0
      %p146 = por %p144, %p145
      %s147 = ssub.s32 %s29, %s41
      %s148 = ssub.s32 %s30, %s37
      %s149 = sor.u32 %s147, %s148
      %p150 = scmp.eq.s32.totalorder %s149, 0
      %s152 = sadd.s32 %s151, 1
      %s153 = scalar_select %p150, %s151, %s152
      %p156 = pneg %p150
      %p157 = scmp.eq.s32.totalorder %s22, 1
      %p158 = por %p156, %p157
      %p159 = scmp.ne.s32.totalorder %s151, %s154
      %p160 = scmp.eq.s32.totalorder %s22, 0
      %p161 = por %p159, %p160
      %p162 = scmp.ne.s32.totalorder %s151, %s154
      %p163 = scmp.eq.s32.totalorder %s27, 1
      %p164 = por %p162, %p163
      %p165 = scmp.ne.s32.totalorder %s154, %s155
      %p166 = scmp.eq.s32.totalorder %s27, 0
      %p167 = por %p165, %p166
      %p168 = scmp.ne.s32.totalorder %s154, %s155
      %p169 = scmp.eq.s32.totalorder %s28, 1
      %p170 = por %p168, %p169
      %p172 = scmp.ne.s32.totalorder %s155, %s171
      %p173 = scmp.eq.s32.totalorder %s28, 0
      %p174 = por %p172, %p173
      %s175 = ssub.s32 %s29, %s41
      %s176 = ssub.s32 %s30, %s37
      %s177 = sor.u32 %s175, %s176
      %p178 = scmp.eq.s32.totalorder %s177, 0
      %s180 = sadd.s32 %s179, 1
      %s181 = scalar_select %p178, %s179, %s180
      %p184 = pneg %p178
      %p185 = scmp.eq.s32.totalorder %s22, 1
      %p186 = por %p184, %p185
      %p187 = scmp.ne.s32.totalorder %s179, %s182
      %p188 = scmp.eq.s32.totalorder %s22, 0
      %p189 = por %p187, %p188
      %p190 = scmp.ne.s32.totalorder %s179, %s182
      %p191 = scmp.eq.s32.totalorder %s27, 1
      %p192 = por %p190, %p191
      %p193 = scmp.ne.s32.totalorder %s182, %s183
      %p194 = scmp.eq.s32.totalorder %s27, 0
      %p195 = por %p193, %p194
      %p196 = scmp.ne.s32.totalorder %s182, %s183
      %p197 = scmp.eq.s32.totalorder %s28, 1
      %p198 = por %p196, %p197
      %p200 = scmp.ne.s32.totalorder %s183, %s199
      %p201 = scmp.eq.s32.totalorder %s28, 0
      %p202 = por %p200, %p201
      %p203 = scmp.le.s32.totalorder 1, %s22
      %p204 = scmp.lt.s32.totalorder %s22, 3
      %p205 = pnand %p203, %p204
      %p206 = pneg %p205
      // Predicated region
      $region9: #{tpu_custom_call.1} parent=5 // pred_check
        _
      $region10: #{tpu_custom_call.1} parent=5 // pred_check_branch
        %208 = sbr.rel (%p205) target = $region12
      $region11: #{tpu_custom_call.1} parent=5 // pred_region
        %s209 = ssub.s32 %s22, 1
        // Predicated region
        $region13: #{tpu_custom_call.1} parent=11 // pred_check
          %p210 = pneg %p55
        $region14: #{tpu_custom_call.1} parent=11 // pred_check_branch
          %212 = sbr.rel (%p210) target = $region16
        $region15: #{tpu_custom_call.1} parent=11 // pred_region
          %214 = vsyncadd [#allocation5], 0
          %s216 = sshll.u32 %s0, 4
          %s217 = int_to_ptr.hbm [resolvable:$true] %s216
          %219 = dma.hbm_to_smem %s217, 16, [#allocation2], [#allocation5]
        $region16: #{tpu_custom_call.1} parent=11 // pred_fallthru
          _
        // Predicated region
        $region17: #{tpu_custom_call.1} parent=11 // pred_check
          %p220 = pneg %p76
        $region18: #{tpu_custom_call.1} parent=11 // pred_check_branch
          %222 = sbr.rel (%p220) target = $region20
        $region19: #{tpu_custom_call.1} parent=11 // pred_region
          %224 = vsyncadd [#allocation8], 0
          %s226 = sshll.u32 %s1, 4
          %s227 = int_to_ptr.hbm [resolvable:$true] %s226
          %229 = dma.hbm_to_smem %s227, 16, [#allocation7], [#allocation8]
        $region20: #{tpu_custom_call.1} parent=11 // pred_fallthru
          _
        // Predicated region
        $region21: #{tpu_custom_call.1} parent=11 // pred_check
          %p230 = pneg %p97
        $region22: #{tpu_custom_call.1} parent=11 // pred_check_branch
          %232 = sbr.rel (%p230) target = $region24
        $region23: #{tpu_custom_call.1} parent=11 // pred_region
          %234 = vsyncadd [#allocation6], 0
          %s236 = sshll.u32 %s2, 4
          %s237 = int_to_ptr.vmem [resolvable:$true] %s236
          %239 = dma.vmem_to_smem %s237, 16, [#allocation9], [#allocation6]
        $region24: #{tpu_custom_call.1} parent=11 // pred_fallthru
          _
        // Predicated region
        $region25: #{tpu_custom_call.1} parent=11 // pred_check
          %p240 = pneg %p118
        $region26: #{tpu_custom_call.1} parent=11 // pred_check_branch
          %242 = sbr.rel (%p240) target = $region28
        $region27: #{tpu_custom_call.1} parent=11 // pred_region
          %244 = vsyncadd [#allocation11], 0
          %s246 = sshll.u32 %s3, 4
          %s247 = int_to_ptr.vmem [resolvable:$true] %s246
          %249 = dma.vmem_to_smem %s247, 16, [#allocation10], [#allocation11]
        $region28: #{tpu_custom_call.1} parent=11 // pred_fallthru
          _
        // Predicated region
        $region29: #{tpu_custom_call.1} parent=11 // pred_check
          %p250 = pneg %p139
        $region30: #{tpu_custom_call.1} parent=11 // pred_check_branch
          %252 = sbr.rel (%p250) target = $region32
        $region31: #{tpu_custom_call.1} parent=11 // pred_region
          %254 = vsyncadd [#allocation11], 0
          %s256 = sshll.u32 %s4, 4
          %s257 = int_to_ptr.vmem [resolvable:$true] %s256
          %259 = dma.vmem_to_smem %s257, 16, [#allocation12], [#allocation11]
        $region32: #{tpu_custom_call.1} parent=11 // pred_fallthru
          _
      $region12: #{tpu_custom_call.1} parent=5 // pred_fallthru
        _
      %p260 = scmp.lt.s32.totalorder %s22, 2
      // Predicated region
      $region33: #{tpu_custom_call.1} parent=5 // pred_check
        %p261 = pneg %p260
      $region34: #{tpu_custom_call.1} parent=5 // pred_check_branch
        %263 = sbr.rel (%p261) target = $region36
      $region35: #{tpu_custom_call.1} parent=5 // pred_region
        // Predicated region
        $region37: #{tpu_custom_call.1} parent=35 // pred_check
          %p264 = pneg %p161
        $region38: #{tpu_custom_call.1} parent=35 // pred_check_branch
          %266 = sbr.rel (%p264) target = $region40
        $region39: #{tpu_custom_call.1} parent=35 // pred_region
          %s267 = sand.u32 %s151, 1
          %s268 = scalar_lea.sflag [#allocation3], %s267
          %s269 = sand.u32 %s151, 1
          %s270 = smul.addr %s269, 24
          %s271 = scalar_lea.vmem [#allocation13], %s270
          %273 = vsyncadd %s268, 0
          %s274 = smul.addr %s29, 3
          %s275 = sadd.s32 %s30, %s274
          %s276 = smul.addr %s275, 8
          %s277 = scalar_lea.hbm %s5, %s276
          %s278 = sshll.u32 %s277, 4
          %s279 = int_to_ptr.hbm [resolvable:$true] %s278
          %s280 = sshll.u32 %s271, 4
          %s281 = int_to_ptr.vmem [resolvable:$true] %s280
          %286 = dma.hbm_to_vmem [thread:$0]  %s279, 384, %s281, %s268, 128, 128, 8
        $region40: #{tpu_custom_call.1} parent=35 // pred_fallthru
          _
      $region36: #{tpu_custom_call.1} parent=5 // pred_fallthru
        _
      %p287 = scmp.le.s32.totalorder 1, %s22
      %p288 = scmp.lt.s32.totalorder %s22, 3
      %p289 = pnand %p287, %p288
      %p290 = pneg %p289
      // Predicated region
      $region41: #{tpu_custom_call.1} parent=5 // pred_check
        _
      $region42: #{tpu_custom_call.1} parent=5 // pred_check_branch
        %292 = sbr.rel (%p289) target = $region44
      $region43: #{tpu_custom_call.1} parent=5 // pred_region
        %s293 = ssub.s32 %s22, 1
        // Predicated region
        $region45: #{tpu_custom_call.1} parent=43 // pred_check
          %p294 = pneg %p55
        $region46: #{tpu_custom_call.1} parent=43 // pred_check_branch
          %296 = sbr.rel (%p294) target = $region48
        $region47: #{tpu_custom_call.1} parent=43 // pred_region
          %298 = dma.done [#allocation5], 16
        $region48: #{tpu_custom_call.1} parent=43 // pred_fallthru
          _
        // Predicated region
        $region49: #{tpu_custom_call.1} parent=43 // pred_check
          %p299 = pneg %p76
        $region50: #{tpu_custom_call.1} parent=43 // pred_check_branch
          %301 = sbr.rel (%p299) target = $region52
        $region51: #{tpu_custom_call.1} parent=43 // pred_region
          %303 = dma.done [#allocation8], 16
        $region52: #{tpu_custom_call.1} parent=43 // pred_fallthru
          _
        // Predicated region
        $region53: #{tpu_custom_call.1} parent=43 // pred_check
          %p304 = pneg %p97
        $region54: #{tpu_custom_call.1} parent=43 // pred_check_branch
          %306 = sbr.rel (%p304) target = $region56
        $region55: #{tpu_custom_call.1} parent=43 // pred_region
          %308 = dma.done [#allocation6], 16
        $region56: #{tpu_custom_call.1} parent=43 // pred_fallthru
          _
        // Predicated region
        $region57: #{tpu_custom_call.1} parent=43 // pred_check
          %p309 = pneg %p118
        $region58: #{tpu_custom_call.1} parent=43 // pred_check_branch
          %311 = sbr.rel (%p309) target = $region60
        $region59: #{tpu_custom_call.1} parent=43 // pred_region
          %313 = dma.done [#allocation11], 16
        $region60: #{tpu_custom_call.1} parent=43 // pred_fallthru
          _
        // Predicated region
        $region61: #{tpu_custom_call.1} parent=43 // pred_check
          %p314 = pneg %p139
        $region62: #{tpu_custom_call.1} parent=43 // pred_check_branch
          %316 = sbr.rel (%p314) target = $region64
        $region63: #{tpu_custom_call.1} parent=43 // pred_region
          %318 = dma.done [#allocation11], 16
        $region64: #{tpu_custom_call.1} parent=43 // pred_fallthru
          _
        %s319 = sand.u32 %s154, 1
        %s320 = scalar_lea.sflag [#allocation3], %s319
        %s321 = sand.u32 %s154, 1
        %s322 = smul.addr %s321, 24
        %s323 = scalar_lea.vmem [#allocation13], %s322
        // Predicated region
        $region65: #{tpu_custom_call.1} parent=43 // pred_check
          %p324 = pneg %p167
        $region66: #{tpu_custom_call.1} parent=43 // pred_check_branch
          %326 = sbr.rel (%p324) target = $region68
        $region67: #{tpu_custom_call.1} parent=43 // pred_region
          %328 = dma.done %s320, 384
        $region68: #{tpu_custom_call.1} parent=43 // pred_fallthru
          _
        %329 = sfence
        %p330 = pneg %p55
        %p331 = pneg %p52
        %p332 = pneg %p76
        %p333 = pneg %p73
        %p334 = pneg %p97
        %p335 = pneg %p94
        %p336 = pneg %p118
        %p337 = pneg %p115
        %p338 = pneg %p139
        %p339 = pneg %p136
        %s340 = sand.u32 %s154, 1
        %s341 = scalar_lea.sflag [#allocation3], %s340
        %s342 = sand.u32 %s154, 1
        %s343 = smul.addr %s342, 24
        %s344 = scalar_lea.vmem [#allocation13], %s343
        %p345 = pneg %p167
        %p346 = pneg %p164
        %p347 = pneg %p195
        %p348 = pneg %p192
        %s349 = sand.u32 %s182, 1
        %s350 = scalar_lea.sflag [#allocation4], %s349
        %s351 = sand.u32 %s182, 1
        %s352 = smul.addr %s351, 24
        %s353 = scalar_lea.vmem [#allocation14], %s352
        %s354 = sld [smem:[#allocation2 + %s31]]
        %s355 = sld [smem:[#allocation7 + %s31]]
        %s356 = sld [smem:[#allocation9 + %s31]]
        %s357 = sld [smem:[#allocation10 + %s31]]
        %s358 = sld [smem:[#allocation12 + %s31]]
        %v359 = vld [vmem:[%s323] sm:$0xff]
        %s360 = scalar_lea.vmem %s323, 8 [#allocation13]
        %v361 = vld [vmem:[%s360] sm:$0xff]
        %v362 = vstv %s354
        %v363 = vmul.f32 %v359, %v362
        %v364 = vstv %s355
        %v365 = vmul.f32 %v361, %v364
        %v366 = vsub.f32 %v363, %v365
        %v367 = vstv %s356
        %v368 = vadd.f32 %v366, %v367
        %369 = vst [vmem:[%s353] sm:$0xff] %v368
        %v370 = vmul.f32 %v359, %v364
        %v371 = vmul.f32 %v361, %v362
        %v372 = vadd.f32 %v370, %v371
        %v373 = vstv %s357
        %v374 = vadd.f32 %v372, %v373
        %s375 = scalar_lea.vmem %s353, 8 [#allocation14]
        %376 = vst [vmem:[%s375] sm:$0xff] %v374
        %s377 = scalar_lea.vmem %s323, 16 [#allocation13]
        %v378 = vld [vmem:[%s377] sm:$0xff]
        %v379 = vstv %s358
        %v380 = vadd.f32 %v378, %v379
        %v381 = vadd.f32 %v380, 3.1415927
        %v382 = vmul.f32 %v381, 0.15915494
        %v383 = vfloor.f32 %v382
        %v384 = vmul.f32 %v383, 6.2831855
        %v385 = vsub.f32 %v380, %v384
        %s386 = scalar_lea.vmem %s353, 16 [#allocation14]
        %387 = vst [vmem:[%s386] sm:$0xff] %v385
        %s388 = sand.u32 %s182, 1
        %s389 = scalar_lea.sflag [#allocation4], %s388
        %s390 = sand.u32 %s182, 1
        %s391 = smul.addr %s390, 24
        %s392 = scalar_lea.vmem [#allocation14], %s391
        // Predicated region
        $region69: #{tpu_custom_call.1} parent=43 // pred_check
          %p393 = pneg %p192
        $region70: #{tpu_custom_call.1} parent=43 // pred_check_branch
          %395 = sbr.rel (%p393) target = $region72
        $region71: #{tpu_custom_call.1} parent=43 // pred_region
          %397 = vsyncadd %s389, 0
          %s398 = smul.addr %s31, 3
          %s399 = sadd.s32 %s32, %s398
          %s400 = smul.addr %s399, 8
          %s401 = scalar_lea.hbm %s6, %s400
          %s402 = sshll.u32 %s392, 4
          %s403 = int_to_ptr.vmem [resolvable:$true] %s402
          %s404 = sshll.u32 %s401, 4
          %s405 = int_to_ptr.hbm [resolvable:$true] %s404
          %410 = dma.vmem_to_hbm [thread:$0]  %s403, 384, %s405, %s389, 128, 128, 8
        $region72: #{tpu_custom_call.1} parent=43 // pred_fallthru
          _
      $region44: #{tpu_custom_call.1} parent=5 // pred_fallthru
        _
      %p411 = scmp.le.s32.totalorder 2, %s22
      // Predicated region
      $region73: #{tpu_custom_call.1} parent=5 // pred_check
        %p412 = pneg %p411
      $region74: #{tpu_custom_call.1} parent=5 // pred_check_branch
        %414 = sbr.rel (%p412) target = $region76
      $region75: #{tpu_custom_call.1} parent=5 // pred_region
        %s415 = ssub.s32 %s22, 2
        // Predicated region
        $region77: #{tpu_custom_call.1} parent=75 // pred_check
          %p416 = pneg %p198
        $region78: #{tpu_custom_call.1} parent=75 // pred_check_branch
          %418 = sbr.rel (%p416) target = $region80
        $region79: #{tpu_custom_call.1} parent=75 // pred_region
          %s419 = sand.u32 %s183, 1
          %s420 = scalar_lea.sflag [#allocation4], %s419
          %s421 = sand.u32 %s183, 1
          %s422 = smul.addr %s421, 24
          %s423 = scalar_lea.vmem [#allocation14], %s422
          %425 = dma.done %s420, 384
        $region80: #{tpu_custom_call.1} parent=75 // pred_fallthru
          _
      $region76: #{tpu_custom_call.1} parent=5 // pred_fallthru
        _
    $region6: #{tpu_custom_call.1} parent=1 // loop_footer
      %s26 = sadd.s32 1, %s22
    $region7: #{tpu_custom_call.1} parent=1 // loop_footer_branch
      %21 = sbr.rel target = $region3
    $region8: #{tpu_custom_call.1} parent=1 // loop_exit
      _
    %426 = vsyncpa [#allocation3], 1
    %s427 = scalar_lea.sflag [#allocation3], 1
    %428 = vsyncpa %s427, 1
    %429 = vsyncpa [#allocation4], 1
    %s430 = scalar_lea.sflag [#allocation4], 1
    %431 = vsyncpa %s430, 1
    %432 = vsyncpa [#allocation5], 1
    %s433 = scalar_lea.sflag [#allocation5], 1
    %434 = vsyncpa %s433, 1
    %435 = vsyncpa [#allocation8], 1
    %436 = vsyncpa [#allocation6], 1
    %s437 = scalar_lea.sflag [#allocation6], 1
    %438 = vsyncpa %s437, 1
    %439 = vsyncpa [#allocation11], 1

</llo_original>
